<compile_context>
chip_gen: v5e
topology: v5e:2x2
jax: 0.10.0
libtpu: 0.0.40
codegen_flags: <defaults>
</compile_context>

<pallas_src>
import functools
import math

import jax
import jax.numpy as jnp
from jax import lax
from jax.experimental import pallas as pl
from jax.experimental.pallas import tpu as pltpu


# ------------------------------ fused kernel -------------------------------

def _mha_kernel(xq_ref, xk_ref, xv_ref,
                wq_ref, bq_ref, wk_ref, bk_ref, wv_ref, bv_ref,
                wo_ref, bo_ref, *rest,
                batch, sq, sk, num_heads, head_dim, has_mask):
    if has_mask:
        mask_ref, o_ref = rest
    else:
        (o_ref,) = rest
        mask_ref = None

    bf16 = jnp.bfloat16
    f32 = jnp.float32
    d_model = num_heads * head_dim

    xq = xq_ref[...].astype(bf16)                       # (B*Sq, D)
    xk = xk_ref[...].astype(bf16)                       # (B*Sk, D)
    xv = xv_ref[...].astype(bf16)                       # (B*Sk, D)

    # ---- QKV projections on the flattened slabs (M = B*S) ----
    # Weights are already bf16; wq/bq carry the folded 1/sqrt(Dh) scale.
    q = jnp.dot(xq, wq_ref[...], preferred_element_type=f32) + bq_ref[...]
    k = jnp.dot(xk, wk_ref[...], preferred_element_type=f32) + bk_ref[...]
    v = jnp.dot(xv, wv_ref[...], preferred_element_type=f32) + bv_ref[...]

    wo = wo_ref[...]                                    # (D, D) bf16, loaded once
    bo = bo_ref[...]                                    # (1, D) f32

    # ---- per-batch / per-head attention, accumulated through Wo ----
    for b in range(batch):
        q0, k0 = b * sq, b * sk
        acc = jnp.zeros((sq, d_model), f32)
        for h in range(num_heads):
            lo = h * head_dim
            qh = q[q0:q0 + sq, lo:lo + head_dim].astype(bf16)   # (Sq, Dh)
            kh = k[k0:k0 + sk, lo:lo + head_dim].astype(bf16)   # (Sk, Dh)
            vh = v[k0:k0 + sk, lo:lo + head_dim].astype(bf16)   # (Sk, Dh)

            # scores = qh @ kh^T : contract last dims, no materialized K^T.
            # Scale already folded into the Q projection.
            s = lax.dot_general(qh, kh, (((1,), (1,)), ((), ())),
                                preferred_element_type=f32)      # (Sq, Sk)

            if mask_ref is not None:
                s = jnp.where(mask_ref[b, h] == 0, -jnp.inf, s)

            # numerically stable softmax (f32 VPU, EUP approx reciprocal)
            s = s - jnp.max(s, axis=-1, keepdims=True)
            p = jnp.exp(s)
            p = p * pl.reciprocal(jnp.sum(p, axis=-1, keepdims=True),
                                  approx=True)

            oh = jnp.dot(p.astype(bf16), vh, preferred_element_type=f32)
            # Accumulate the output projection per head — no concat, no
            # (Sq, D) "attn" intermediate.
            acc = acc + jnp.dot(oh.astype(bf16), wo[lo:lo + head_dim, :],
                                preferred_element_type=f32)

        o_ref[pl.ds(q0, sq), :] = (acc + bo).astype(o_ref.dtype)


# --------------------------- module-level wrapper ---------------------------

class MultiHeadAttentionPallas:
    def __init__(self, d_model, num_heads, key):
        assert d_model % num_heads == 0, "d_model must be divisible by num_heads"
        self.d_model = d_model
        self.num_heads = num_heads
        self.head_dim = d_model // num_heads

        ks = jax.random.split(key, 8)
        bound = 1.0 / math.sqrt(d_model)  # matches nn.Linear default init scale

        def init_w(k):
            # stored as (in_features, out_features) == torch W^T
            return jax.random.uniform(k, (d_model, d_model), jnp.float32,
                                      -bound, bound)

        def init_b(k):
            return jax.random.uniform(k, (d_model,), jnp.float32, -bound, bound)

        # Original f32 parameters (kept for the reference / torch parity).
        self.params = dict(
            wq=init_w(ks[0]), bq=init_b(ks[1]),
            wk=init_w(ks[2]), bk=init_b(ks[3]),
            wv=init_w(ks[4]), bv=init_b(ks[5]),
            wo=init_w(ks[6]), bo=init_b(ks[7]),
        )

        # Kernel operands: bf16 weights (half the HBM->VMEM bytes and VMEM
        # residency, no in-kernel casts), f32 biases, attention scale folded
        # into the Q projection at init (free — not a per-call prescale).
        scale = 1.0 / math.sqrt(self.head_dim)
        p = self.params
        self.wq = (p["wq"] * scale).astype(jnp.bfloat16)
        self.bq = (p["bq"] * scale)[None, :].astype(jnp.float32)
        self.wk = p["wk"].astype(jnp.bfloat16)
        self.bk = p["bk"][None, :]
        self.wv = p["wv"].astype(jnp.bfloat16)
        self.bv = p["bv"][None, :]
        self.wo = p["wo"].astype(jnp.bfloat16)
        self.bo = p["bo"][None, :]

    def __call__(self, query, key, value, mask=None):
        B, Sq, D = query.shape
        Sk = key.shape[1]
        assert D == self.d_model and value.shape[1] == Sk
        H, Dh = self.num_heads, self.head_dim

        # Flatten to (B*S, D) slabs: larger M for the projection matmuls and a
        # single grid step for the whole problem (overhead-bound at small
        # shapes).  The reshape is contiguous metadata plumbing, not compute.
        xq = query.reshape(B * Sq, D)
        xk = key.reshape(B * Sk, D)
        xv = value.reshape(B * Sk, D)

        operands = [xq, xk, xv, self.wq, self.bq, self.wk, self.bk,
                    self.wv, self.bv, self.wo, self.bo]

        has_mask = mask is not None
        if has_mask:
            # torch semantics: scores.masked_fill(mask == 0, -inf) with mask
            # broadcast against (B, H, Sq, Sk) scores.
            mask = jnp.broadcast_to(jnp.asarray(mask),
                                    (B, H, Sq, Sk)).astype(jnp.int32)
            operands.append(mask)

        kernel = functools.partial(
            _mha_kernel, batch=B, sq=Sq, sk=Sk, num_heads=H, head_dim=Dh,
            has_mask=has_mask)

        vmem_spec = pl.BlockSpec(memory_space=pltpu.MemorySpace.VMEM)

        flops = 4 * B * (Sq * D * D + Sk * D * D + Sq * Sk * D)
        bytes_accessed = (
            4 * (B * Sq * D + 2 * B * Sk * D)        # f32 activations in
            + 4 * B * Sq * D                         # f32 output
            + 2 * 4 * D * D + 4 * 4 * D              # bf16 weights + f32 biases
            + (4 * B * H * Sq * Sk if has_mask else 0))

        out = pl.pallas_call(
            kernel,
            out_shape=jax.ShapeDtypeStruct((B * Sq, D), query.dtype),
            in_specs=[vmem_spec] * len(operands),
            out_specs=vmem_spec,
            compiler_params=pltpu.CompilerParams(
                vmem_limit_bytes=32 * 1024 * 1024),
            cost_estimate=pl.CostEstimate(
                flops=flops,
                transcendentals=B * H * Sq * Sk,       # exp in the softmax
                bytes_accessed=bytes_accessed),
        )(*operands)
        return out.reshape(B, Sq, D)


# --------------------------------- main -------------------------------------

if __name__ == "__main__":
    d_model = 32      # toy width; real models (D >= 128) are lane-dense (item 8)
    num_heads = 4
    batch = 2
    seq = 8

    root = jax.random.PRNGKey(0)
    k_param, k_q, k_k, k_v = jax.random.split(root, 4)

    mha = MultiHeadAttentionPallas(d_model, num_heads, k_param)

    query = jax.random.normal(k_q, (batch, seq, d_model), jnp.float32)
    key = jax.random.normal(k_k, (batch, seq, d_model), jnp.float32)
    value = jax.random.normal(k_v, (batch, seq, d_model), jnp.float32)

    # Pure-JAX f32 reference of the original torch module's math.
    def ref_forward(q, k, v, mask=None):
        p = mha.params
        D, H = d_model, num_heads
        Dh = D // H
        B, S, _ = q.shape
        Q = q.reshape(-1, D) @ p["wq"] + p["bq"]
        K = k.reshape(-1, D) @ p["wk"] + p["bk"]
        V = v.reshape(-1, D) @ p["wv"] + p["bv"]
        Q = Q.reshape(B, S, H, Dh).transpose(0, 2, 1, 3)
        K = K.reshape(B, S, H, Dh).transpose(0, 2, 1, 3)
        V = V.reshape(B, S, H, Dh).transpose(0, 2, 1, 3)
        scores = jnp.einsum("bhqd,bhkd->bhqk", Q, K) / jnp.sqrt(jnp.float32(Dh))
        if mask is not None:
            m = jnp.broadcast_to(jnp.asarray(mask), scores.shape)
            scores = jnp.where(m == 0, -jnp.inf, scores)
        attn = jax.nn.softmax(scores, axis=-1)
        o = jnp.einsum("bhqk,bhkd->bhqd", attn, V)
        o = o.transpose(0, 2, 1, 3).reshape(B, S, D)
        return (o.reshape(-1, D) @ p["wo"] + p["bo"]).reshape(B, S, D)

    # mask=None path
    out = mha(query, key, value)
    jax.block_until_ready(out)
    ref = ref_forward(query, key, value)
    # Tolerance accounts for bf16 MXU operands (f32 accumulation) and the
    # EUP approx reciprocal in the softmax denominator.
    assert jnp.allclose(out, ref, atol=5e-2, rtol=5e-2), \
        "Pallas output mismatch vs reference (mask=None)"

    # masked path (causal mask; masked_fill(mask == 0, -inf) semantics)
    causal = jnp.tril(jnp.ones((seq, seq), jnp.int32))
    out_m = mha(query, key, value, mask=causal)
    jax.block_until_ready(out_m)
    ref_m = ref_forward(query, key, value, mask=causal)
    assert jnp.allclose(out_m, ref_m, atol=5e-2, rtol=5e-2), \
        "Pallas output mismatch vs reference (causal mask)"

    print("KERNEL_OK")
</pallas_src>

<mosaic_0001>
module attributes {stable_mosaic.version = 11 : i64} {
  func.func @_mha_kernel(%arg0: memref<16x32xf32, #tpu.memory_space<vmem>>, %arg1: memref<16x32xf32, #tpu.memory_space<vmem>>, %arg2: memref<16x32xf32, #tpu.memory_space<vmem>>, %arg3: memref<32x32xbf16, #tpu.memory_space<vmem>>, %arg4: memref<1x32xf32, #tpu.memory_space<vmem>>, %arg5: memref<32x32xbf16, #tpu.memory_space<vmem>>, %arg6: memref<1x32xf32, #tpu.memory_space<vmem>>, %arg7: memref<32x32xbf16, #tpu.memory_space<vmem>>, %arg8: memref<1x32xf32, #tpu.memory_space<vmem>>, %arg9: memref<32x32xbf16, #tpu.memory_space<vmem>>, %arg10: memref<1x32xf32, #tpu.memory_space<vmem>>, %arg11: memref<16x32xf32, #tpu.memory_space<vmem>>) attributes {dimension_semantics = [], scalar_prefetch = 0 : i64, scratch_operands = 0 : i64, tpu.core_type = #tpu.core_type<tc>} {
    %c0 = arith.constant 0 : index
    %c0_0 = arith.constant 0 : index
    %0 = vector.load %arg0[%c0, %c0_0] : memref<16x32xf32, #tpu.memory_space<vmem>>, vector<16x32xf32>
    %1 = arith.truncf %0 : vector<16x32xf32> to vector<16x32xbf16>
    %c0_1 = arith.constant 0 : index
    %c0_2 = arith.constant 0 : index
    %2 = vector.load %arg1[%c0_1, %c0_2] : memref<16x32xf32, #tpu.memory_space<vmem>>, vector<16x32xf32>
    %3 = arith.truncf %2 : vector<16x32xf32> to vector<16x32xbf16>
    %c0_3 = arith.constant 0 : index
    %c0_4 = arith.constant 0 : index
    %4 = vector.load %arg2[%c0_3, %c0_4] : memref<16x32xf32, #tpu.memory_space<vmem>>, vector<16x32xf32>
    %5 = arith.truncf %4 : vector<16x32xf32> to vector<16x32xbf16>
    %c0_5 = arith.constant 0 : index
    %c0_6 = arith.constant 0 : index
    %6 = vector.load %arg3[%c0_5, %c0_6] : memref<32x32xbf16, #tpu.memory_space<vmem>>, vector<32x32xbf16>
    %cst = arith.constant dense<0.000000e+00> : vector<16x32xf32>
    %7 = tpu.matmul %1, %6, %cst {dimension_numbers = #tpu.dot_dimension_numbers<[1], [0], [0], [1], [0, 0, 1, 1], [], []>} : vector<16x32xbf16>, vector<32x32xbf16>, vector<16x32xf32> -> vector<16x32xf32>
    %c0_7 = arith.constant 0 : index
    %c0_8 = arith.constant 0 : index
    %8 = vector.load %arg4[%c0_7, %c0_8] : memref<1x32xf32, #tpu.memory_space<vmem>>, vector<1x32xf32>
    %9 = vector.broadcast %8 : vector<1x32xf32> to vector<16x32xf32>
    %10 = arith.addf %7, %9 : vector<16x32xf32>
    %c0_9 = arith.constant 0 : index
    %c0_10 = arith.constant 0 : index
    %11 = vector.load %arg5[%c0_9, %c0_10] : memref<32x32xbf16, #tpu.memory_space<vmem>>, vector<32x32xbf16>
    %cst_11 = arith.constant dense<0.000000e+00> : vector<16x32xf32>
    %12 = tpu.matmul %3, %11, %cst_11 {dimension_numbers = #tpu.dot_dimension_numbers<[1], [0], [0], [1], [0, 0, 1, 1], [], []>} : vector<16x32xbf16>, vector<32x32xbf16>, vector<16x32xf32> -> vector<16x32xf32>
    %c0_12 = arith.constant 0 : index
    %c0_13 = arith.constant 0 : index
    %13 = vector.load %arg6[%c0_12, %c0_13] : memref<1x32xf32, #tpu.memory_space<vmem>>, vector<1x32xf32>
    %14 = vector.broadcast %13 : vector<1x32xf32> to vector<16x32xf32>
    %15 = arith.addf %12, %14 : vector<16x32xf32>
    %c0_14 = arith.constant 0 : index
    %c0_15 = arith.constant 0 : index
    %16 = vector.load %arg7[%c0_14, %c0_15] : memref<32x32xbf16, #tpu.memory_space<vmem>>, vector<32x32xbf16>
    %cst_16 = arith.constant dense<0.000000e+00> : vector<16x32xf32>
    %17 = tpu.matmul %5, %16, %cst_16 {dimension_numbers = #tpu.dot_dimension_numbers<[1], [0], [0], [1], [0, 0, 1, 1], [], []>} : vector<16x32xbf16>, vector<32x32xbf16>, vector<16x32xf32> -> vector<16x32xf32>
    %c0_17 = arith.constant 0 : index
    %c0_18 = arith.constant 0 : index
    %18 = vector.load %arg8[%c0_17, %c0_18] : memref<1x32xf32, #tpu.memory_space<vmem>>, vector<1x32xf32>
    %19 = vector.broadcast %18 : vector<1x32xf32> to vector<16x32xf32>
    %20 = arith.addf %17, %19 : vector<16x32xf32>
    %c0_19 = arith.constant 0 : index
    %c0_20 = arith.constant 0 : index
    %21 = vector.load %arg9[%c0_19, %c0_20] : memref<32x32xbf16, #tpu.memory_space<vmem>>, vector<32x32xbf16>
    %c0_21 = arith.constant 0 : index
    %c0_22 = arith.constant 0 : index
    %22 = vector.load %arg10[%c0_21, %c0_22] : memref<1x32xf32, #tpu.memory_space<vmem>>, vector<1x32xf32>
    %cst_23 = arith.constant 0.000000e+00 : f32
    %23 = vector.broadcast %cst_23 : f32 to vector<8x32xf32>
    %24 = vector.extract_strided_slice %10 {offsets = [0, 0], sizes = [8, 8], strides = [1, 1]} : vector<16x32xf32> to vector<8x8xf32>
    %25 = arith.truncf %24 : vector<8x8xf32> to vector<8x8xbf16>
    %26 = vector.extract_strided_slice %15 {offsets = [0, 0], sizes = [8, 8], strides = [1, 1]} : vector<16x32xf32> to vector<8x8xf32>
    %27 = arith.truncf %26 : vector<8x8xf32> to vector<8x8xbf16>
    %28 = vector.extract_strided_slice %20 {offsets = [0, 0], sizes = [8, 8], strides = [1, 1]} : vector<16x32xf32> to vector<8x8xf32>
    %29 = arith.truncf %28 : vector<8x8xf32> to vector<8x8xbf16>
    %cst_24 = arith.constant dense<0.000000e+00> : vector<8x8xf32>
    %30 = tpu.matmul %25, %27, %cst_24 {dimension_numbers = #tpu.dot_dimension_numbers<[1], [1], [0], [0], [0, 0, 1, 0], [], []>} : vector<8x8xbf16>, vector<8x8xbf16>, vector<8x8xf32> -> vector<8x8xf32>
    %cst_25 = arith.constant dense<0xFF800000> : vector<8xf32>
    %31 = vector.multi_reduction <maximumf>, %30, %cst_25 [1] : vector<8x8xf32> to vector<8xf32>
    %32 = vector.shape_cast %31 : vector<8xf32> to vector<8x1xf32>
    %33 = vector.broadcast %32 : vector<8x1xf32> to vector<8x8xf32>
    %34 = arith.subf %30, %33 : vector<8x8xf32>
    %35 = math.exp %34 : vector<8x8xf32>
    %cst_26 = arith.constant dense<0.000000e+00> : vector<8xf32>
    %36 = vector.multi_reduction <add>, %35, %cst_26 [1] : vector<8x8xf32> to vector<8xf32>
    %37 = vector.shape_cast %36 : vector<8xf32> to vector<8x1xf32>
    %38 = tpu.reciprocal %37 {approx = true} : vector<8x1xf32> -> vector<8x1xf32>
    %39 = vector.broadcast %38 : vector<8x1xf32> to vector<8x8xf32>
    %40 = arith.mulf %35, %39 : vector<8x8xf32>
    %41 = arith.truncf %40 : vector<8x8xf32> to vector<8x8xbf16>
    %cst_27 = arith.constant dense<0.000000e+00> : vector<8x8xf32>
    %42 = tpu.matmul %41, %29, %cst_27 {dimension_numbers = #tpu.dot_dimension_numbers<[1], [0], [0], [1], [0, 0, 1, 1], [], []>} : vector<8x8xbf16>, vector<8x8xbf16>, vector<8x8xf32> -> vector<8x8xf32>
    %43 = arith.truncf %42 : vector<8x8xf32> to vector<8x8xbf16>
    %44 = vector.extract_strided_slice %21 {offsets = [0, 0], sizes = [8, 32], strides = [1, 1]} : vector<32x32xbf16> to vector<8x32xbf16>
    %cst_28 = arith.constant dense<0.000000e+00> : vector<8x32xf32>
    %45 = tpu.matmul %43, %44, %cst_28 {dimension_numbers = #tpu.dot_dimension_numbers<[1], [0], [0], [1], [0, 0, 1, 1], [], []>} : vector<8x8xbf16>, vector<8x32xbf16>, vector<8x32xf32> -> vector<8x32xf32>
    %46 = arith.addf %23, %45 : vector<8x32xf32>
    %47 = vector.extract_strided_slice %10 {offsets = [0, 8], sizes = [8, 8], strides = [1, 1]} : vector<16x32xf32> to vector<8x8xf32>
    %48 = arith.truncf %47 : vector<8x8xf32> to vector<8x8xbf16>
    %49 = vector.extract_strided_slice %15 {offsets = [0, 8], sizes = [8, 8], strides = [1, 1]} : vector<16x32xf32> to vector<8x8xf32>
    %50 = arith.truncf %49 : vector<8x8xf32> to vector<8x8xbf16>
    %51 = vector.extract_strided_slice %20 {offsets = [0, 8], sizes = [8, 8], strides = [1, 1]} : vector<16x32xf32> to vector<8x8xf32>
    %52 = arith.truncf %51 : vector<8x8xf32> to vector<8x8xbf16>
    %cst_29 = arith.constant dense<0.000000e+00> : vector<8x8xf32>
    %53 = tpu.matmul %48, %50, %cst_29 {dimension_numbers = #tpu.dot_dimension_numbers<[1], [1], [0], [0], [0, 0, 1, 0], [], []>} : vector<8x8xbf16>, vector<8x8xbf16>, vector<8x8xf32> -> vector<8x8xf32>
    %cst_30 = arith.constant dense<0xFF800000> : vector<8xf32>
    %54 = vector.multi_reduction <maximumf>, %53, %cst_30 [1] : vector<8x8xf32> to vector<8xf32>
    %55 = vector.shape_cast %54 : vector<8xf32> to vector<8x1xf32>
    %56 = vector.broadcast %55 : vector<8x1xf32> to vector<8x8xf32>
    %57 = arith.subf %53, %56 : vector<8x8xf32>
    %58 = math.exp %57 : vector<8x8xf32>
    %cst_31 = arith.constant dense<0.000000e+00> : vector<8xf32>
    %59 = vector.multi_reduction <add>, %58, %cst_31 [1] : vector<8x8xf32> to vector<8xf32>
    %60 = vector.shape_cast %59 : vector<8xf32> to vector<8x1xf32>
    %61 = tpu.reciprocal %60 {approx = true} : vector<8x1xf32> -> vector<8x1xf32>
    %62 = vector.broadcast %61 : vector<8x1xf32> to vector<8x8xf32>
    %63 = arith.mulf %58, %62 : vector<8x8xf32>
    %64 = arith.truncf %63 : vector<8x8xf32> to vector<8x8xbf16>
    %cst_32 = arith.constant dense<0.000000e+00> : vector<8x8xf32>
    %65 = tpu.matmul %64, %52, %cst_32 {dimension_numbers = #tpu.dot_dimension_numbers<[1], [0], [0], [1], [0, 0, 1, 1], [], []>} : vector<8x8xbf16>, vector<8x8xbf16>, vector<8x8xf32> -> vector<8x8xf32>
    %66 = arith.truncf %65 : vector<8x8xf32> to vector<8x8xbf16>
    %67 = vector.extract_strided_slice %21 {offsets = [8, 0], sizes = [8, 32], strides = [1, 1]} : vector<32x32xbf16> to vector<8x32xbf16>
    %cst_33 = arith.constant dense<0.000000e+00> : vector<8x32xf32>
    %68 = tpu.matmul %66, %67, %cst_33 {dimension_numbers = #tpu.dot_dimension_numbers<[1], [0], [0], [1], [0, 0, 1, 1], [], []>} : vector<8x8xbf16>, vector<8x32xbf16>, vector<8x32xf32> -> vector<8x32xf32>
    %69 = arith.addf %46, %68 : vector<8x32xf32>
    %70 = vector.extract_strided_slice %10 {offsets = [0, 16], sizes = [8, 8], strides = [1, 1]} : vector<16x32xf32> to vector<8x8xf32>
    %71 = arith.truncf %70 : vector<8x8xf32> to vector<8x8xbf16>
    %72 = vector.extract_strided_slice %15 {offsets = [0, 16], sizes = [8, 8], strides = [1, 1]} : vector<16x32xf32> to vector<8x8xf32>
    %73 = arith.truncf %72 : vector<8x8xf32> to vector<8x8xbf16>
    %74 = vector.extract_strided_slice %20 {offsets = [0, 16], sizes = [8, 8], strides = [1, 1]} : vector<16x32xf32> to vector<8x8xf32>
    %75 = arith.truncf %74 : vector<8x8xf32> to vector<8x8xbf16>
    %cst_34 = arith.constant dense<0.000000e+00> : vector<8x8xf32>
    %76 = tpu.matmul %71, %73, %cst_34 {dimension_numbers = #tpu.dot_dimension_numbers<[1], [1], [0], [0], [0, 0, 1, 0], [], []>} : vector<8x8xbf16>, vector<8x8xbf16>, vector<8x8xf32> -> vector<8x8xf32>
    %cst_35 = arith.constant dense<0xFF800000> : vector<8xf32>
    %77 = vector.multi_reduction <maximumf>, %76, %cst_35 [1] : vector<8x8xf32> to vector<8xf32>
    %78 = vector.shape_cast %77 : vector<8xf32> to vector<8x1xf32>
    %79 = vector.broadcast %78 : vector<8x1xf32> to vector<8x8xf32>
    %80 = arith.subf %76, %79 : vector<8x8xf32>
    %81 = math.exp %80 : vector<8x8xf32>
    %cst_36 = arith.constant dense<0.000000e+00> : vector<8xf32>
    %82 = vector.multi_reduction <add>, %81, %cst_36 [1] : vector<8x8xf32> to vector<8xf32>
    %83 = vector.shape_cast %82 : vector<8xf32> to vector<8x1xf32>
    %84 = tpu.reciprocal %83 {approx = true} : vector<8x1xf32> -> vector<8x1xf32>
    %85 = vector.broadcast %84 : vector<8x1xf32> to vector<8x8xf32>
    %86 = arith.mulf %81, %85 : vector<8x8xf32>
    %87 = arith.truncf %86 : vector<8x8xf32> to vector<8x8xbf16>
    %cst_37 = arith.constant dense<0.000000e+00> : vector<8x8xf32>
    %88 = tpu.matmul %87, %75, %cst_37 {dimension_numbers = #tpu.dot_dimension_numbers<[1], [0], [0], [1], [0, 0, 1, 1], [], []>} : vector<8x8xbf16>, vector<8x8xbf16>, vector<8x8xf32> -> vector<8x8xf32>
    %89 = arith.truncf %88 : vector<8x8xf32> to vector<8x8xbf16>
    %90 = vector.extract_strided_slice %21 {offsets = [16, 0], sizes = [8, 32], strides = [1, 1]} : vector<32x32xbf16> to vector<8x32xbf16>
    %cst_38 = arith.constant dense<0.000000e+00> : vector<8x32xf32>
    %91 = tpu.matmul %89, %90, %cst_38 {dimension_numbers = #tpu.dot_dimension_numbers<[1], [0], [0], [1], [0, 0, 1, 1], [], []>} : vector<8x8xbf16>, vector<8x32xbf16>, vector<8x32xf32> -> vector<8x32xf32>
    %92 = arith.addf %69, %91 : vector<8x32xf32>
    %93 = vector.extract_strided_slice %10 {offsets = [0, 24], sizes = [8, 8], strides = [1, 1]} : vector<16x32xf32> to vector<8x8xf32>
    %94 = arith.truncf %93 : vector<8x8xf32> to vector<8x8xbf16>
    %95 = vector.extract_strided_slice %15 {offsets = [0, 24], sizes = [8, 8], strides = [1, 1]} : vector<16x32xf32> to vector<8x8xf32>
    %96 = arith.truncf %95 : vector<8x8xf32> to vector<8x8xbf16>
    %97 = vector.extract_strided_slice %20 {offsets = [0, 24], sizes = [8, 8], strides = [1, 1]} : vector<16x32xf32> to vector<8x8xf32>
    %98 = arith.truncf %97 : vector<8x8xf32> to vector<8x8xbf16>
    %cst_39 = arith.constant dense<0.000000e+00> : vector<8x8xf32>
    %99 = tpu.matmul %94, %96, %cst_39 {dimension_numbers = #tpu.dot_dimension_numbers<[1], [1], [0], [0], [0, 0, 1, 0], [], []>} : vector<8x8xbf16>, vector<8x8xbf16>, vector<8x8xf32> -> vector<8x8xf32>
    %cst_40 = arith.constant dense<0xFF800000> : vector<8xf32>
    %100 = vector.multi_reduction <maximumf>, %99, %cst_40 [1] : vector<8x8xf32> to vector<8xf32>
    %101 = vector.shape_cast %100 : vector<8xf32> to vector<8x1xf32>
    %102 = vector.broadcast %101 : vector<8x1xf32> to vector<8x8xf32>
    %103 = arith.subf %99, %102 : vector<8x8xf32>
    %104 = math.exp %103 : vector<8x8xf32>
    %cst_41 = arith.constant dense<0.000000e+00> : vector<8xf32>
    %105 = vector.multi_reduction <add>, %104, %cst_41 [1] : vector<8x8xf32> to vector<8xf32>
    %106 = vector.shape_cast %105 : vector<8xf32> to vector<8x1xf32>
    %107 = tpu.reciprocal %106 {approx = true} : vector<8x1xf32> -> vector<8x1xf32>
    %108 = vector.broadcast %107 : vector<8x1xf32> to vector<8x8xf32>
    %109 = arith.mulf %104, %108 : vector<8x8xf32>
    %110 = arith.truncf %109 : vector<8x8xf32> to vector<8x8xbf16>
    %cst_42 = arith.constant dense<0.000000e+00> : vector<8x8xf32>
    %111 = tpu.matmul %110, %98, %cst_42 {dimension_numbers = #tpu.dot_dimension_numbers<[1], [0], [0], [1], [0, 0, 1, 1], [], []>} : vector<8x8xbf16>, vector<8x8xbf16>, vector<8x8xf32> -> vector<8x8xf32>
    %112 = arith.truncf %111 : vector<8x8xf32> to vector<8x8xbf16>
    %113 = vector.extract_strided_slice %21 {offsets = [24, 0], sizes = [8, 32], strides = [1, 1]} : vector<32x32xbf16> to vector<8x32xbf16>
    %cst_43 = arith.constant dense<0.000000e+00> : vector<8x32xf32>
    %114 = tpu.matmul %112, %113, %cst_43 {dimension_numbers = #tpu.dot_dimension_numbers<[1], [0], [0], [1], [0, 0, 1, 1], [], []>} : vector<8x8xbf16>, vector<8x32xbf16>, vector<8x32xf32> -> vector<8x32xf32>
    %115 = arith.addf %92, %114 : vector<8x32xf32>
    %116 = vector.broadcast %22 : vector<1x32xf32> to vector<8x32xf32>
    %117 = arith.addf %115, %116 : vector<8x32xf32>
    %c0_44 = arith.constant 0 : index
    %c0_45 = arith.constant 0 : index
    %118 = vector.load %arg11[%c0_44, %c0_45] : memref<16x32xf32, #tpu.memory_space<vmem>>, vector<8x32xf32>
    tpu.vector_store %arg11[%c0_44, %c0_45], %117 {strides = array<i32>} : memref<16x32xf32, #tpu.memory_space<vmem>>, vector<8x32xf32>,
    %cst_46 = arith.constant 0.000000e+00 : f32
    %119 = vector.broadcast %cst_46 : f32 to vector<8x32xf32>
    %120 = vector.extract_strided_slice %10 {offsets = [8, 0], sizes = [8, 8], strides = [1, 1]} : vector<16x32xf32> to vector<8x8xf32>
    %121 = arith.truncf %120 : vector<8x8xf32> to vector<8x8xbf16>
    %122 = vector.extract_strided_slice %15 {offsets = [8, 0], sizes = [8, 8], strides = [1, 1]} : vector<16x32xf32> to vector<8x8xf32>
    %123 = arith.truncf %122 : vector<8x8xf32> to vector<8x8xbf16>
    %124 = vector.extract_strided_slice %20 {offsets = [8, 0], sizes = [8, 8], strides = [1, 1]} : vector<16x32xf32> to vector<8x8xf32>
    %125 = arith.truncf %124 : vector<8x8xf32> to vector<8x8xbf16>
    %cst_47 = arith.constant dense<0.000000e+00> : vector<8x8xf32>
    %126 = tpu.matmul %121, %123, %cst_47 {dimension_numbers = #tpu.dot_dimension_numbers<[1], [1], [0], [0], [0, 0, 1, 0], [], []>} : vector<8x8xbf16>, vector<8x8xbf16>, vector<8x8xf32> -> vector<8x8xf32>
    %cst_48 = arith.constant dense<0xFF800000> : vector<8xf32>
    %127 = vector.multi_reduction <maximumf>, %126, %cst_48 [1] : vector<8x8xf32> to vector<8xf32>
    %128 = vector.shape_cast %127 : vector<8xf32> to vector<8x1xf32>
    %129 = vector.broadcast %128 : vector<8x1xf32> to vector<8x8xf32>
    %130 = arith.subf %126, %129 : vector<8x8xf32>
    %131 = math.exp %130 : vector<8x8xf32>
    %cst_49 = arith.constant dense<0.000000e+00> : vector<8xf32>
    %132 = vector.multi_reduction <add>, %131, %cst_49 [1] : vector<8x8xf32> to vector<8xf32>
    %133 = vector.shape_cast %132 : vector<8xf32> to vector<8x1xf32>
    %134 = tpu.reciprocal %133 {approx = true} : vector<8x1xf32> -> vector<8x1xf32>
    %135 = vector.broadcast %134 : vector<8x1xf32> to vector<8x8xf32>
    %136 = arith.mulf %131, %135 : vector<8x8xf32>
    %137 = arith.truncf %136 : vector<8x8xf32> to vector<8x8xbf16>
    %cst_50 = arith.constant dense<0.000000e+00> : vector<8x8xf32>
    %138 = tpu.matmul %137, %125, %cst_50 {dimension_numbers = #tpu.dot_dimension_numbers<[1], [0], [0], [1], [0, 0, 1, 1], [], []>} : vector<8x8xbf16>, vector<8x8xbf16>, vector<8x8xf32> -> vector<8x8xf32>
    %139 = arith.truncf %138 : vector<8x8xf32> to vector<8x8xbf16>
    %140 = vector.extract_strided_slice %21 {offsets = [0, 0], sizes = [8, 32], strides = [1, 1]} : vector<32x32xbf16> to vector<8x32xbf16>
    %cst_51 = arith.constant dense<0.000000e+00> : vector<8x32xf32>
    %141 = tpu.matmul %139, %140, %cst_51 {dimension_numbers = #tpu.dot_dimension_numbers<[1], [0], [0], [1], [0, 0, 1, 1], [], []>} : vector<8x8xbf16>, vector<8x32xbf16>, vector<8x32xf32> -> vector<8x32xf32>
    %142 = arith.addf %119, %141 : vector<8x32xf32>
    %143 = vector.extract_strided_slice %10 {offsets = [8, 8], sizes = [8, 8], strides = [1, 1]} : vector<16x32xf32> to vector<8x8xf32>
    %144 = arith.truncf %143 : vector<8x8xf32> to vector<8x8xbf16>
    %145 = vector.extract_strided_slice %15 {offsets = [8, 8], sizes = [8, 8], strides = [1, 1]} : vector<16x32xf32> to vector<8x8xf32>
    %146 = arith.truncf %145 : vector<8x8xf32> to vector<8x8xbf16>
    %147 = vector.extract_strided_slice %20 {offsets = [8, 8], sizes = [8, 8], strides = [1, 1]} : vector<16x32xf32> to vector<8x8xf32>
    %148 = arith.truncf %147 : vector<8x8xf32> to vector<8x8xbf16>
    %cst_52 = arith.constant dense<0.000000e+00> : vector<8x8xf32>
    %149 = tpu.matmul %144, %146, %cst_52 {dimension_numbers = #tpu.dot_dimension_numbers<[1], [1], [0], [0], [0, 0, 1, 0], [], []>} : vector<8x8xbf16>, vector<8x8xbf16>, vector<8x8xf32> -> vector<8x8xf32>
    %cst_53 = arith.constant dense<0xFF800000> : vector<8xf32>
    %150 = vector.multi_reduction <maximumf>, %149, %cst_53 [1] : vector<8x8xf32> to vector<8xf32>
    %151 = vector.shape_cast %150 : vector<8xf32> to vector<8x1xf32>
    %152 = vector.broadcast %151 : vector<8x1xf32> to vector<8x8xf32>
    %153 = arith.subf %149, %152 : vector<8x8xf32>
    %154 = math.exp %153 : vector<8x8xf32>
    %cst_54 = arith.constant dense<0.000000e+00> : vector<8xf32>
    %155 = vector.multi_reduction <add>, %154, %cst_54 [1] : vector<8x8xf32> to vector<8xf32>
    %156 = vector.shape_cast %155 : vector<8xf32> to vector<8x1xf32>
    %157 = tpu.reciprocal %156 {approx = true} : vector<8x1xf32> -> vector<8x1xf32>
    %158 = vector.broadcast %157 : vector<8x1xf32> to vector<8x8xf32>
    %159 = arith.mulf %154, %158 : vector<8x8xf32>
    %160 = arith.truncf %159 : vector<8x8xf32> to vector<8x8xbf16>
    %cst_55 = arith.constant dense<0.000000e+00> : vector<8x8xf32>
    %161 = tpu.matmul %160, %148, %cst_55 {dimension_numbers = #tpu.dot_dimension_numbers<[1], [0], [0], [1], [0, 0, 1, 1], [], []>} : vector<8x8xbf16>, vector<8x8xbf16>, vector<8x8xf32> -> vector<8x8xf32>
    %162 = arith.truncf %161 : vector<8x8xf32> to vector<8x8xbf16>
    %163 = vector.extract_strided_slice %21 {offsets = [8, 0], sizes = [8, 32], strides = [1, 1]} : vector<32x32xbf16> to vector<8x32xbf16>
    %cst_56 = arith.constant dense<0.000000e+00> : vector<8x32xf32>
    %164 = tpu.matmul %162, %163, %cst_56 {dimension_numbers = #tpu.dot_dimension_numbers<[1], [0], [0], [1], [0, 0, 1, 1], [], []>} : vector<8x8xbf16>, vector<8x32xbf16>, vector<8x32xf32> -> vector<8x32xf32>
    %165 = arith.addf %142, %164 : vector<8x32xf32>
    %166 = vector.extract_strided_slice %10 {offsets = [8, 16], sizes = [8, 8], strides = [1, 1]} : vector<16x32xf32> to vector<8x8xf32>
    %167 = arith.truncf %166 : vector<8x8xf32> to vector<8x8xbf16>
    %168 = vector.extract_strided_slice %15 {offsets = [8, 16], sizes = [8, 8], strides = [1, 1]} : vector<16x32xf32> to vector<8x8xf32>
    %169 = arith.truncf %168 : vector<8x8xf32> to vector<8x8xbf16>
    %170 = vector.extract_strided_slice %20 {offsets = [8, 16], sizes = [8, 8], strides = [1, 1]} : vector<16x32xf32> to vector<8x8xf32>
    %171 = arith.truncf %170 : vector<8x8xf32> to vector<8x8xbf16>
    %cst_57 = arith.constant dense<0.000000e+00> : vector<8x8xf32>
    %172 = tpu.matmul %167, %169, %cst_57 {dimension_numbers = #tpu.dot_dimension_numbers<[1], [1], [0], [0], [0, 0, 1, 0], [], []>} : vector<8x8xbf16>, vector<8x8xbf16>, vector<8x8xf32> -> vector<8x8xf32>
    %cst_58 = arith.constant dense<0xFF800000> : vector<8xf32>
    %173 = vector.multi_reduction <maximumf>, %172, %cst_58 [1] : vector<8x8xf32> to vector<8xf32>
    %174 = vector.shape_cast %173 : vector<8xf32> to vector<8x1xf32>
    %175 = vector.broadcast %174 : vector<8x1xf32> to vector<8x8xf32>
    %176 = arith.subf %172, %175 : vector<8x8xf32>
    %177 = math.exp %176 : vector<8x8xf32>
    %cst_59 = arith.constant dense<0.000000e+00> : vector<8xf32>
    %178 = vector.multi_reduction <add>, %177, %cst_59 [1] : vector<8x8xf32> to vector<8xf32>
    %179 = vector.shape_cast %178 : vector<8xf32> to vector<8x1xf32>
    %180 = tpu.reciprocal %179 {approx = true} : vector<8x1xf32> -> vector<8x1xf32>
    %181 = vector.broadcast %180 : vector<8x1xf32> to vector<8x8xf32>
    %182 = arith.mulf %177, %181 : vector<8x8xf32>
    %183 = arith.truncf %182 : vector<8x8xf32> to vector<8x8xbf16>
    %cst_60 = arith.constant dense<0.000000e+00> : vector<8x8xf32>
    %184 = tpu.matmul %183, %171, %cst_60 {dimension_numbers = #tpu.dot_dimension_numbers<[1], [0], [0], [1], [0, 0, 1, 1], [], []>} : vector<8x8xbf16>, vector<8x8xbf16>, vector<8x8xf32> -> vector<8x8xf32>
    %185 = arith.truncf %184 : vector<8x8xf32> to vector<8x8xbf16>
    %186 = vector.extract_strided_slice %21 {offsets = [16, 0], sizes = [8, 32], strides = [1, 1]} : vector<32x32xbf16> to vector<8x32xbf16>
    %cst_61 = arith.constant dense<0.000000e+00> : vector<8x32xf32>
    %187 = tpu.matmul %185, %186, %cst_61 {dimension_numbers = #tpu.dot_dimension_numbers<[1], [0], [0], [1], [0, 0, 1, 1], [], []>} : vector<8x8xbf16>, vector<8x32xbf16>, vector<8x32xf32> -> vector<8x32xf32>
    %188 = arith.addf %165, %187 : vector<8x32xf32>
    %189 = vector.extract_strided_slice %10 {offsets = [8, 24], sizes = [8, 8], strides = [1, 1]} : vector<16x32xf32> to vector<8x8xf32>
    %190 = arith.truncf %189 : vector<8x8xf32> to vector<8x8xbf16>
    %191 = vector.extract_strided_slice %15 {offsets = [8, 24], sizes = [8, 8], strides = [1, 1]} : vector<16x32xf32> to vector<8x8xf32>
    %192 = arith.truncf %191 : vector<8x8xf32> to vector<8x8xbf16>
    %193 = vector.extract_strided_slice %20 {offsets = [8, 24], sizes = [8, 8], strides = [1, 1]} : vector<16x32xf32> to vector<8x8xf32>
    %194 = arith.truncf %193 : vector<8x8xf32> to vector<8x8xbf16>
    %cst_62 = arith.constant dense<0.000000e+00> : vector<8x8xf32>
    %195 = tpu.matmul %190, %192, %cst_62 {dimension_numbers = #tpu.dot_dimension_numbers<[1], [1], [0], [0], [0, 0, 1, 0], [], []>} : vector<8x8xbf16>, vector<8x8xbf16>, vector<8x8xf32> -> vector<8x8xf32>
    %cst_63 = arith.constant dense<0xFF800000> : vector<8xf32>
    %196 = vector.multi_reduction <maximumf>, %195, %cst_63 [1] : vector<8x8xf32> to vector<8xf32>
    %197 = vector.shape_cast %196 : vector<8xf32> to vector<8x1xf32>
    %198 = vector.broadcast %197 : vector<8x1xf32> to vector<8x8xf32>
    %199 = arith.subf %195, %198 : vector<8x8xf32>
    %200 = math.exp %199 : vector<8x8xf32>
    %cst_64 = arith.constant dense<0.000000e+00> : vector<8xf32>
    %201 = vector.multi_reduction <add>, %200, %cst_64 [1] : vector<8x8xf32> to vector<8xf32>
    %202 = vector.shape_cast %201 : vector<8xf32> to vector<8x1xf32>
    %203 = tpu.reciprocal %202 {approx = true} : vector<8x1xf32> -> vector<8x1xf32>
    %204 = vector.broadcast %203 : vector<8x1xf32> to vector<8x8xf32>
    %205 = arith.mulf %200, %204 : vector<8x8xf32>
    %206 = arith.truncf %205 : vector<8x8xf32> to vector<8x8xbf16>
    %cst_65 = arith.constant dense<0.000000e+00> : vector<8x8xf32>
    %207 = tpu.matmul %206, %194, %cst_65 {dimension_numbers = #tpu.dot_dimension_numbers<[1], [0], [0], [1], [0, 0, 1, 1], [], []>} : vector<8x8xbf16>, vector<8x8xbf16>, vector<8x8xf32> -> vector<8x8xf32>
    %208 = arith.truncf %207 : vector<8x8xf32> to vector<8x8xbf16>
    %209 = vector.extract_strided_slice %21 {offsets = [24, 0], sizes = [8, 32], strides = [1, 1]} : vector<32x32xbf16> to vector<8x32xbf16>
    %cst_66 = arith.constant dense<0.000000e+00> : vector<8x32xf32>
    %210 = tpu.matmul %208, %209, %cst_66 {dimension_numbers = #tpu.dot_dimension_numbers<[1], [0], [0], [1], [0, 0, 1, 1], [], []>} : vector<8x8xbf16>, vector<8x32xbf16>, vector<8x32xf32> -> vector<8x32xf32>
    %211 = arith.addf %188, %210 : vector<8x32xf32>
    %212 = vector.broadcast %22 : vector<1x32xf32> to vector<8x32xf32>
    %213 = arith.addf %211, %212 : vector<8x32xf32>
    %c8 = arith.constant 8 : index
    %c0_67 = arith.constant 0 : index
    %214 = vector.load %arg11[%c8, %c0_67] : memref<16x32xf32, #tpu.memory_space<vmem>>, vector<8x32xf32>
    tpu.vector_store %arg11[%c8, %c0_67], %213 {strides = array<i32>} : memref<16x32xf32, #tpu.memory_space<vmem>>, vector<8x32xf32>,
    return
  }
}

</mosaic_0001>

<llo_original>
// kernel: tpu_custom_call.1
$region0: #{tpu_custom_call.1}
  #allocation0 [shape = 'u32[]', space=smem, size = 0x4, offset = 0x4, fixed_abs, tag = 'smem constant byte address 0x4 - core index']
  #allocation1 [shape = 'u32[72,128]{1,0:T(1,128)}', space=vmem, size = 0x9000, scoped, tag = 'internal scratch']
  %s0 = inlined_call_operand.hbm [shape: f32[16,32], index: 0, kind: input, shape index: {}]
  %s1 = inlined_call_operand.hbm [shape: f32[16,32], index: 1, kind: input, shape index: {}]
  %s2 = inlined_call_operand.hbm [shape: f32[16,32], index: 2, kind: input, shape index: {}]
  %s3 = inlined_call_operand.hbm [shape: bf16[32,32], index: 3, kind: input, shape index: {}]
  %s4 = inlined_call_operand.vmem [shape: f32[1,32], index: 4, kind: input, shape index: {}]
  %s5 = inlined_call_operand.hbm [shape: bf16[32,32], index: 5, kind: input, shape index: {}]
  %s6 = inlined_call_operand.vmem [shape: f32[1,32], index: 6, kind: input, shape index: {}]
  %s7 = inlined_call_operand.hbm [shape: bf16[32,32], index: 7, kind: input, shape index: {}]
  %s8 = inlined_call_operand.vmem [shape: f32[1,32], index: 8, kind: input, shape index: {}]
  %s9 = inlined_call_operand.hbm [shape: bf16[32,32], index: 9, kind: input, shape index: {}]
  %s10 = inlined_call_operand.vmem [shape: f32[1,32], index: 10, kind: input, shape index: {}]
  %s11 = inlined_call_operand.hbm [shape: f32[16,32], index: 11, kind: output, shape index: {}]
  %s12 = sld [smem:[#allocation0]]
  $region82: #{tpu_custom_call.1} parent=0
    _
  %s14 = ssub.s32 1, %s12
  %s15 = scalar_select 0, %s14, %s12
  $region1: #{tpu_custom_call.1} parent=0
    #allocation2 [shape = 'u8[8192]{0}', space=vmem, size = 0x2000, scoped, tag = 'input window, operand 0, single buffered']
    #allocation3 [shape = 's32[1]{0}', space=sflag, size = 0x4, scoped, tag = 'scoped memory for tpu_custom_call.1']
    #allocation4 [shape = 's32[1]{0}', space=sflag, size = 0x4, scoped, tag = 'scoped memory for tpu_custom_call.1']
    #allocation5 [shape = 'u8[8192]{0}', space=vmem, size = 0x2000, scoped, tag = 'input window, operand 1, single buffered']
    #allocation6 [shape = 's32[1]{0}', space=sflag, size = 0x4, scoped, tag = 'scoped memory for tpu_custom_call.1']
    #allocation7 [shape = 'u8[8192]{0}', space=vmem, size = 0x2000, scoped, tag = 'input window, operand 2, single buffered']
    #allocation8 [shape = 'u8[8192]{0}', space=vmem, size = 0x2000, scoped, tag = 'input window, operand 3, single buffered']
    #allocation9 [shape = 's32[1]{0}', space=sflag, size = 0x4, scoped, tag = 'scoped memory for tpu_custom_call.1']
    #allocation10 [shape = 'u8[8192]{0}', space=vmem, size = 0x2000, scoped, tag = 'input window, operand 5, single buffered']
    #allocation11 [shape = 'u8[8192]{0}', space=vmem, size = 0x2000, scoped, tag = 'input window, operand 7, single buffered']
    #allocation12 [shape = 's32[1]{0}', space=sflag, size = 0x4, scoped, tag = 'scoped memory for tpu_custom_call.1']
    #allocation13 [shape = 'u8[8192]{0}', space=vmem, size = 0x2000, scoped, tag = 'input window, operand 9, single buffered']
    #allocation14 [shape = 'u8[8192]{0}', space=vmem, size = 0x2000, scoped, tag = 'output window, operand 0, single buffered']
    %16 = vsyncpa [#allocation3], 0
    %17 = vsyncpa [#allocation6], 0
    %18 = vsyncpa [#allocation9], 0
    %19 = vsyncpa [#allocation12], 0
    %20 = vsyncpa [#allocation4], 0
    // Predicated region
    $region2: #{tpu_custom_call.1} parent=1 // pred_check
      _
    $region3: #{tpu_custom_call.1} parent=1 // pred_check_branch
      %22 = sbr.rel (0) target = $region5
    $region4: #{tpu_custom_call.1} parent=1 // pred_region
      %24 = vsyncadd [#allocation3], 0
      %s25 = sshll.u32 %s0, 4
      %s26 = int_to_ptr.hbm [resolvable:$true] %s25
      %s27 = sshll.u32 [#allocation2], 4
      %s28 = int_to_ptr.vmem [resolvable:$true] %s27
      %33 = dma.hbm_to_vmem [thread:$0]  %s26, 256, %s28, [#allocation3], 128, 128, 8
    $region5: #{tpu_custom_call.1} parent=1 // pred_fallthru
      _
    // Predicated region
    $region6: #{tpu_custom_call.1} parent=1 // pred_check
      _
    $region7: #{tpu_custom_call.1} parent=1 // pred_check_branch
      %35 = sbr.rel (0) target = $region9
    $region8: #{tpu_custom_call.1} parent=1 // pred_region
      %37 = vsyncadd [#allocation6], 0
      %s38 = sshll.u32 %s1, 4
      %s39 = int_to_ptr.hbm [resolvable:$true] %s38
      %s40 = sshll.u32 [#allocation5], 4
      %s41 = int_to_ptr.vmem [resolvable:$true] %s40
      %46 = dma.hbm_to_vmem [thread:$0]  %s39, 256, %s41, [#allocation6], 128, 128, 8
    $region9: #{tpu_custom_call.1} parent=1 // pred_fallthru
      _
    // Predicated region
    $region10: #{tpu_custom_call.1} parent=1 // pred_check
      _
    $region11: #{tpu_custom_call.1} parent=1 // pred_check_branch
      %48 = sbr.rel (0) target = $region13
    $region12: #{tpu_custom_call.1} parent=1 // pred_region
      %50 = vsyncadd [#allocation6], 0
      %s51 = sshll.u32 %s2, 4
      %s52 = int_to_ptr.hbm [resolvable:$true] %s51
      %s53 = sshll.u32 [#allocation7], 4
      %s54 = int_to_ptr.vmem [resolvable:$true] %s53
      %59 = dma.hbm_to_vmem [thread:$0]  %s52, 256, %s54, [#allocation6], 128, 128, 8
    $region13: #{tpu_custom_call.1} parent=1 // pred_fallthru
      _
    // Predicated region
    $region14: #{tpu_custom_call.1} parent=1 // pred_check
      _
    $region15: #{tpu_custom_call.1} parent=1 // pred_check_branch
      %61 = sbr.rel (0) target = $region17
    $region16: #{tpu_custom_call.1} parent=1 // pred_region
      %63 = vsyncadd [#allocation9], 0
      %s64 = sshll.u32 %s3, 4
      %s65 = int_to_ptr.hbm [resolvable:$true] %s64
      %s66 = sshll.u32 [#allocation8], 4
      %s67 = int_to_ptr.vmem [resolvable:$true] %s66
      %72 = dma.hbm_to_vmem [thread:$0]  %s65, 256, %s67, [#allocation9], 64, 64, 4
    $region17: #{tpu_custom_call.1} parent=1 // pred_fallthru
      _
    // Predicated region
    $region18: #{tpu_custom_call.1} parent=1 // pred_check
      _
    $region19: #{tpu_custom_call.1} parent=1 // pred_check_branch
      %74 = sbr.rel (0) target = $region21
    $region20: #{tpu_custom_call.1} parent=1 // pred_region
      _
    $region21: #{tpu_custom_call.1} parent=1 // pred_fallthru
      _
    // Predicated region
    $region22: #{tpu_custom_call.1} parent=1 // pred_check
      _
    $region23: #{tpu_custom_call.1} parent=1 // pred_check_branch
      %76 = sbr.rel (0) target = $region25
    $region24: #{tpu_custom_call.1} parent=1 // pred_region
      %78 = vsyncadd [#allocation9], 0
      %s79 = sshll.u32 %s5, 4
      %s80 = int_to_ptr.hbm [resolvable:$true] %s79
      %s81 = sshll.u32 [#allocation10], 4
      %s82 = int_to_ptr.vmem [resolvable:$true] %s81
      %87 = dma.hbm_to_vmem [thread:$0]  %s80, 256, %s82, [#allocation9], 64, 64, 4
    $region25: #{tpu_custom_call.1} parent=1 // pred_fallthru
      _
    // Predicated region
    $region26: #{tpu_custom_call.1} parent=1 // pred_check
      _
    $region27: #{tpu_custom_call.1} parent=1 // pred_check_branch
      %89 = sbr.rel (0) target = $region29
    $region28: #{tpu_custom_call.1} parent=1 // pred_region
      _
    $region29: #{tpu_custom_call.1} parent=1 // pred_fallthru
      _
    // Predicated region
    $region30: #{tpu_custom_call.1} parent=1 // pred_check
      _
    $region31: #{tpu_custom_call.1} parent=1 // pred_check_branch
      %91 = sbr.rel (0) target = $region33
    $region32: #{tpu_custom_call.1} parent=1 // pred_region
      %93 = vsyncadd [#allocation12], 0
      %s94 = sshll.u32 %s7, 4
      %s95 = int_to_ptr.hbm [resolvable:$true] %s94
      %s96 = sshll.u32 [#allocation11], 4
      %s97 = int_to_ptr.vmem [resolvable:$true] %s96
      %102 = dma.hbm_to_vmem [thread:$0]  %s95, 256, %s97, [#allocation12], 64, 64, 4
    $region33: #{tpu_custom_call.1} parent=1 // pred_fallthru
      _
    // Predicated region
    $region34: #{tpu_custom_call.1} parent=1 // pred_check
      _
    $region35: #{tpu_custom_call.1} parent=1 // pred_check_branch
      %104 = sbr.rel (0) target = $region37
    $region36: #{tpu_custom_call.1} parent=1 // pred_region
      _
    $region37: #{tpu_custom_call.1} parent=1 // pred_fallthru
      _
    // Predicated region
    $region38: #{tpu_custom_call.1} parent=1 // pred_check
      _
    $region39: #{tpu_custom_call.1} parent=1 // pred_check_branch
      %106 = sbr.rel (0) target = $region41
    $region40: #{tpu_custom_call.1} parent=1 // pred_region
      %108 = vsyncadd [#allocation12], 0
      %s109 = sshll.u32 %s9, 4
      %s110 = int_to_ptr.hbm [resolvable:$true] %s109
      %s111 = sshll.u32 [#allocation13], 4
      %s112 = int_to_ptr.vmem [resolvable:$true] %s111
      %117 = dma.hbm_to_vmem [thread:$0]  %s110, 256, %s112, [#allocation12], 64, 64, 4
    $region41: #{tpu_custom_call.1} parent=1 // pred_fallthru
      _
    // Predicated region
    $region42: #{tpu_custom_call.1} parent=1 // pred_check
      _
    $region43: #{tpu_custom_call.1} parent=1 // pred_check_branch
      %119 = sbr.rel (0) target = $region45
    $region44: #{tpu_custom_call.1} parent=1 // pred_region
      _
    $region45: #{tpu_custom_call.1} parent=1 // pred_fallthru
      _
    // Predicated region
    $region46: #{tpu_custom_call.1} parent=1 // pred_check
      _
    $region47: #{tpu_custom_call.1} parent=1 // pred_check_branch
      %121 = sbr.rel (0) target = $region49
    $region48: #{tpu_custom_call.1} parent=1 // pred_region
      %123 = dma.done [#allocation3], 256
    $region49: #{tpu_custom_call.1} parent=1 // pred_fallthru
      _
    // Predicated region
    $region50: #{tpu_custom_call.1} parent=1 // pred_check
      _
    $region51: #{tpu_custom_call.1} parent=1 // pred_check_branch
      %125 = sbr.rel (0) target = $region53
    $region52: #{tpu_custom_call.1} parent=1 // pred_region
      %127 = dma.done [#allocation6], 256
    $region53: #{tpu_custom_call.1} parent=1 // pred_fallthru
      _
    // Predicated region
    $region54: #{tpu_custom_call.1} parent=1 // pred_check
      _
    $region55: #{tpu_custom_call.1} parent=1 // pred_check_branch
      %129 = sbr.rel (0) target = $region57
    $region56: #{tpu_custom_call.1} parent=1 // pred_region
      %131 = dma.done [#allocation6], 256
    $region57: #{tpu_custom_call.1} parent=1 // pred_fallthru
      _
    // Predicated region
    $region58: #{tpu_custom_call.1} parent=1 // pred_check
      _
    $region59: #{tpu_custom_call.1} parent=1 // pred_check_branch
      %133 = sbr.rel (0) target = $region61
    $region60: #{tpu_custom_call.1} parent=1 // pred_region
      %135 = dma.done [#allocation9], 256
    $region61: #{tpu_custom_call.1} parent=1 // pred_fallthru
      _
    // Predicated region
    $region62: #{tpu_custom_call.1} parent=1 // pred_check
      _
    $region63: #{tpu_custom_call.1} parent=1 // pred_check_branch
      %137 = sbr.rel (0) target = $region65
    $region64: #{tpu_custom_call.1} parent=1 // pred_region
      %139 = dma.done [#allocation9], 256
    $region65: #{tpu_custom_call.1} parent=1 // pred_fallthru
      _
    // Predicated region
    $region66: #{tpu_custom_call.1} parent=1 // pred_check
      _
    $region67: #{tpu_custom_call.1} parent=1 // pred_check_branch
      %141 = sbr.rel (0) target = $region69
    $region68: #{tpu_custom_call.1} parent=1 // pred_region
      %143 = dma.done [#allocation12], 256
    $region69: #{tpu_custom_call.1} parent=1 // pred_fallthru
      _
    // Predicated region
    $region70: #{tpu_custom_call.1} parent=1 // pred_check
      _
    $region71: #{tpu_custom_call.1} parent=1 // pred_check_branch
      %145 = sbr.rel (0) target = $region73
    $region72: #{tpu_custom_call.1} parent=1 // pred_region
      %147 = dma.done [#allocation12], 256
    $region73: #{tpu_custom_call.1} parent=1 // pred_fallthru
      _
    %v149 = vld [vmem:[#allocation2] sm:$0xff]
    %v150 = vld [vmem:[#allocation2 + $0x8] sm:$0xff]
    %v151 = vpack.c.bf16 %v150, %v149
    %v152 = vld [vmem:[#allocation5] sm:$0xff]
    %v153 = vld [vmem:[#allocation5 + $0x8] sm:$0xff]
    %v154 = vpack.c.bf16 %v153, %v152
    %v155 = vld [vmem:[#allocation7] sm:$0xff]
    %v156 = vld [vmem:[#allocation7 + $0x8] sm:$0xff]
    %v157 = vpack.c.bf16 %v156, %v155
    %v158 = vld [vmem:[#allocation8] sm:$0xf]
    %v159 = vld [vmem:[#allocation8 + $0x4] sm:$0xf]
    %v160 = vld [vmem:[#allocation8 + $0x8] sm:$0xf]
    %v161 = vld [vmem:[#allocation8 + $0xc] sm:$0xf]
    %v162 = vld [vmem:[%s4] sm:$0x1]
    %v164 = vperm.slane %v162, 0
    %v170 = vunpack.c.l.b16 %v158
    %v171 = vunpack.c.l.b16 %v159
    %v172 = vunpack.c.l.b16 %v160
    %v173 = vunpack.c.l.b16 %v161
    %v174 = vpack.c.b16 %v171, %v170
    %v175 = vpack.c.b16 %v173, %v172
    %vm178 = vcmask 261120
    %v180 = vsel %vm178, %v151, 0
    %182 = vmatpush.bf16.msra.mxu0 0
    %183 = vmatpush.bf16.msra.mxu0 0
    %184 = vmatpush.bf16.msra.mxu0 0
    %185 = vmatpush.bf16.msra.mxu0 0
    %186 = vmatpush.bf16.msra.mxu0 0
    %187 = vmatpush.bf16.msra.mxu0 0
    %188 = vmatpush.bf16.msra.mxu0 %v175
    %189 = vmatpush.bf16.msra.mxu0 %v174
    %190 = vmatmul.bf16.gmra.mxu0 %v180
    %v191 = vpop.f32.mrf.mxu0
    %v192 = vadd.f32 %v164, %v191
    %v193 = vpop.f32.mrf.mxu0
    %v194 = vadd.f32 %v164, %v193
    %195 = vdwg.mxu0
    %v196 = vld [vmem:[#allocation10] sm:$0xf]
    %v197 = vld [vmem:[#allocation10 + $0x4] sm:$0xf]
    %v198 = vld [vmem:[#allocation10 + $0x8] sm:$0xf]
    %v199 = vld [vmem:[#allocation10 + $0xc] sm:$0xf]
    %v200 = vld [vmem:[%s6] sm:$0x1]
    %v202 = vperm.slane %v200, 0
    %v208 = vunpack.c.l.b16 %v196
    %v209 = vunpack.c.l.b16 %v197
    %v210 = vunpack.c.l.b16 %v198
    %v211 = vunpack.c.l.b16 %v199
    %v212 = vpack.c.b16 %v209, %v208
    %v213 = vpack.c.b16 %v211, %v210
    %v217 = vsel %vm178, %v154, 0
    %219 = vmatpush.bf16.msra.mxu0 0
    %220 = vmatpush.bf16.msra.mxu0 0
    %221 = vmatpush.bf16.msra.mxu0 0
    %222 = vmatpush.bf16.msra.mxu0 0
    %223 = vmatpush.bf16.msra.mxu0 0
    %224 = vmatpush.bf16.msra.mxu0 0
    %225 = vmatpush.bf16.msra.mxu0 %v213
    %226 = vmatpush.bf16.msra.mxu0 %v212
    %227 = vmatmul.bf16.gmra.mxu0 %v217
    %v228 = vpop.f32.mrf.mxu0
    %v229 = vadd.f32 %v202, %v228
    %v230 = vpop.f32.mrf.mxu0
    %v231 = vadd.f32 %v202, %v230
    %232 = vdwg.mxu0
    %v233 = vld [vmem:[#allocation11] sm:$0xf]
    %v234 = vld [vmem:[#allocation11 + $0x4] sm:$0xf]
    %v235 = vld [vmem:[#allocation11 + $0x8] sm:$0xf]
    %v236 = vld [vmem:[#allocation11 + $0xc] sm:$0xf]
    %v237 = vld [vmem:[%s8] sm:$0x1]
    %v239 = vperm.slane %v237, 0
    %v245 = vunpack.c.l.b16 %v233
    %v246 = vunpack.c.l.b16 %v234
    %v247 = vunpack.c.l.b16 %v235
    %v248 = vunpack.c.l.b16 %v236
    %v249 = vpack.c.b16 %v246, %v245
    %v250 = vpack.c.b16 %v248, %v247
    %v254 = vsel %vm178, %v157, 0
    %256 = vmatpush.bf16.msra.mxu0 0
    %257 = vmatpush.bf16.msra.mxu0 0
    %258 = vmatpush.bf16.msra.mxu0 0
    %259 = vmatpush.bf16.msra.mxu0 0
    %260 = vmatpush.bf16.msra.mxu0 0
    %261 = vmatpush.bf16.msra.mxu0 0
    %262 = vmatpush.bf16.msra.mxu0 %v250
    %263 = vmatpush.bf16.msra.mxu0 %v249
    %264 = vmatmul.bf16.gmra.mxu0 %v254
    %v265 = vpop.f32.mrf.mxu0
    %v266 = vadd.f32 %v239, %v265
    %v267 = vpop.f32.mrf.mxu0
    %v268 = vadd.f32 %v239, %v267
    %269 = vdwg.mxu0
    %v270 = vld [vmem:[#allocation13] sm:$0xf]
    %v271 = vld [vmem:[#allocation13 + $0x4] sm:$0xf]
    %v272 = vld [vmem:[#allocation13 + $0x8] sm:$0xf]
    %v273 = vld [vmem:[#allocation13 + $0xc] sm:$0xf]
    %v274 = vld [vmem:[%s10] sm:$0x1]
    %v275 = vpack.c.bf16 %v192, %v192
    %v276 = vpack.c.bf16 %v229, %v229
    %v277 = vpack.c.bf16 %v266, %v266
    %vm278 = vcmask 64512
    %v280 = vsel %vm278, %v275, 0
    %v283 = vsel %vm278, %v276, 0
    %285 = vmatpush.bf16.xpose.msra.mxu0 0
    %286 = vmatpush.bf16.xpose.msra.mxu0 0
    %287 = vmatpush.bf16.xpose.msra.mxu0 0
    %288 = vmatpush.bf16.xpose.msra.mxu0 0
    %289 = vmatpush.bf16.xpose.msra.mxu0 0
    %290 = vmatpush.bf16.xpose.msra.mxu0 0
    %291 = vmatpush.bf16.xpose.msra.mxu0 0
    %292 = vmatpush.bf16.xpose.msra.mxu0 %v283
    %293 = vmatmul.bf16.gmra.mxu0 %v280
    %v294 = vpop.f32.mrf.mxu0
    %v295 = vadd.f32 0.0, %v294
    %v296 = vpop.f32.mrf.mxu0
    %297 = vdwg.mxu0
    %v298 = vsel %vm278, %v295, -inf
    %299 = vmax.xlane.f32.xlu0 %v298
    %v300 = vpop.xlane.xlu0 %299
    %v301 = vsub.f32 %v295, %v300
    %v302 = vmul.f32 %v301, 1.442695
    %v303 = vpow.pop %v302
    %v304 = vsel %vm278, %v303, 0.0
    %305 = vadd.xlane.f32.xlu0 %v304
    %v306 = vpop.xlane.xlu0 %305
    %v307 = vrcp.pop %v306
    %v308 = vmul.f32 %v303, %v307
    %v309 = vpack.c.bf16 %v308, %v308
    %v311 = vsel %vm278, %v309, 0
    %vm313 = vcmask 1043456
    %v315 = vsel %vm313, %v277, 0
    %317 = vmatpush.bf16.msra.mxu0 0
    %318 = vmatpush.bf16.msra.mxu0 0
    %319 = vmatpush.bf16.msra.mxu0 0
    %320 = vmatpush.bf16.msra.mxu0 0
    %321 = vmatpush.bf16.msra.mxu0 0
    %322 = vmatpush.bf16.msra.mxu0 0
    %323 = vmatpush.bf16.msra.mxu0 0
    %324 = vmatpush.bf16.msra.mxu0 %v315
    %325 = vmatmul.bf16.gmra.mxu0 %v311
    %v326 = vpop.f32.mrf.mxu0
    %v327 = vadd.f32 0.0, %v326
    %v328 = vpop.f32.mrf.mxu0
    %329 = vdwg.mxu0
    %v330 = vpack.c.bf16 %v327, %v327
    %332 = vrot.lane.b32.xlu0 %v275, 120
    %v333 = vpop.permute.xlu0 %332
    %335 = vrot.lane.b32.xlu0 %v276, 120
    %v336 = vpop.permute.xlu0 %335
    %v338 = vsel %vm278, %v333, 0
    %v341 = vsel %vm278, %v336, 0
    %343 = vmatpush.bf16.xpose.msra.mxu0 0
    %344 = vmatpush.bf16.xpose.msra.mxu0 0
    %345 = vmatpush.bf16.xpose.msra.mxu0 0
    %346 = vmatpush.bf16.xpose.msra.mxu0 0
    %347 = vmatpush.bf16.xpose.msra.mxu0 0
    %348 = vmatpush.bf16.xpose.msra.mxu0 0
    %349 = vmatpush.bf16.xpose.msra.mxu0 0
    %350 = vmatpush.bf16.xpose.msra.mxu0 %v341
    %351 = vmatmul.bf16.gmra.mxu0 %v338
    %v352 = vpop.f32.mrf.mxu0
    %v353 = vadd.f32 0.0, %v352
    %v354 = vpop.f32.mrf.mxu0
    %355 = vdwg.mxu0
    %v356 = vsel %vm278, %v353, -inf
    %357 = vmax.xlane.f32.xlu0 %v356
    %v358 = vpop.xlane.xlu0 %357
    %v359 = vsub.f32 %v353, %v358
    %v360 = vmul.f32 %v359, 1.442695
    %v361 = vpow.pop %v360
    %v362 = vsel %vm278, %v361, 0.0
    %363 = vadd.xlane.f32.xlu0 %v362
    %v364 = vpop.xlane.xlu0 %363
    %v365 = vrcp.pop %v364
    %v366 = vmul.f32 %v361, %v365
    %v367 = vpack.c.bf16 %v366, %v366
    %369 = vrot.lane.b32.xlu0 %v277, 120
    %v370 = vpop.permute.xlu0 %369
    %v372 = vsel %vm278, %v367, 0
    %v375 = vsel %vm313, %v370, 0
    %377 = vmatpush.bf16.msra.mxu0 0
    %378 = vmatpush.bf16.msra.mxu0 0
    %379 = vmatpush.bf16.msra.mxu0 0
    %380 = vmatpush.bf16.msra.mxu0 0
    %381 = vmatpush.bf16.msra.mxu0 0
    %382 = vmatpush.bf16.msra.mxu0 0
    %383 = vmatpush.bf16.msra.mxu0 0
    %384 = vmatpush.bf16.msra.mxu0 %v375
    %385 = vmatmul.bf16.gmra.mxu0 %v372
    %v386 = vpop.f32.mrf.mxu0
    %v387 = vadd.f32 0.0, %v386
    %v388 = vpop.f32.mrf.mxu0
    %389 = vdwg.mxu0
    %v390 = vpack.c.bf16 %v387, %v387
    %v392 = vsel %vm278, %v390, 0
    %v395 = vsel %vm313, %v271, 0
    %397 = vmatpush.bf16.msra.mxu0 0
    %398 = vmatpush.bf16.msra.mxu0 0
    %399 = vmatpush.bf16.msra.mxu0 0
    %400 = vmatpush.bf16.msra.mxu0 0
    %401 = vmatpush.bf16.msra.mxu0 0
    %402 = vmatpush.bf16.msra.mxu0 0
    %403 = vmatpush.bf16.msra.mxu0 0
    %404 = vmatpush.bf16.msra.mxu0 %v395
    %405 = vmatmul.bf16.gmra.mxu0 %v392
    %v406 = vpop.f32.mrf.mxu0
    %v407 = vadd.f32 0.0, %v406
    %v408 = vpop.f32.mrf.mxu0
    %409 = vdwg.mxu0
    %v411 = vsel %vm278, %v330, 0
    %v414 = vsel %vm313, %v270, 0
    %416 = vmatpush.bf16.msra.mxu0 0
    %417 = vmatpush.bf16.msra.mxu0 0
    %418 = vmatpush.bf16.msra.mxu0 0
    %419 = vmatpush.bf16.msra.mxu0 0
    %420 = vmatpush.bf16.msra.mxu0 0
    %421 = vmatpush.bf16.msra.mxu0 0
    %422 = vmatpush.bf16.msra.mxu0 0
    %423 = vmatpush.bf16.msra.mxu0 %v414
    %424 = vmatmul.bf16.gmra.mxu0 %v411
    %v425 = vpop.f32.mrf.mxu0
    %v426 = vadd.f32 %v407, %v425
    %v427 = vpop.f32.mrf.mxu0
    %428 = vdwg.mxu0
    %429 = vrot.lane.b32.xlu0 %v275, 112
    %v430 = vpop.permute.xlu0 %429
    %431 = vrot.lane.b32.xlu0 %v276, 112
    %v432 = vpop.permute.xlu0 %431
    %v434 = vsel %vm278, %v430, 0
    %v437 = vsel %vm278, %v432, 0
    %439 = vmatpush.bf16.xpose.msra.mxu0 0
    %440 = vmatpush.bf16.xpose.msra.mxu0 0
    %441 = vmatpush.bf16.xpose.msra.mxu0 0
    %442 = vmatpush.bf16.xpose.msra.mxu0 0
    %443 = vmatpush.bf16.xpose.msra.mxu0 0
    %444 = vmatpush.bf16.xpose.msra.mxu0 0
    %445 = vmatpush.bf16.xpose.msra.mxu0 0
    %446 = vmatpush.bf16.xpose.msra.mxu0 %v437
    %447 = vmatmul.bf16.gmra.mxu0 %v434
    %v448 = vpop.f32.mrf.mxu0
    %v449 = vadd.f32 0.0, %v448
    %v450 = vpop.f32.mrf.mxu0
    %451 = vdwg.mxu0
    %v452 = vsel %vm278, %v449, -inf
    %453 = vmax.xlane.f32.xlu0 %v452
    %v454 = vpop.xlane.xlu0 %453
    %v455 = vsub.f32 %v449, %v454
    %v456 = vmul.f32 %v455, 1.442695
    %v457 = vpow.pop %v456
    %v458 = vsel %vm278, %v457, 0.0
    %459 = vadd.xlane.f32.xlu0 %v458
    %v460 = vpop.xlane.xlu0 %459
    %v461 = vrcp.pop %v460
    %v462 = vmul.f32 %v457, %v461
    %v463 = vpack.c.bf16 %v462, %v462
    %464 = vrot.lane.b32.xlu0 %v277, 112
    %v465 = vpop.permute.xlu0 %464
    %v467 = vsel %vm278, %v463, 0
    %v470 = vsel %vm313, %v465, 0
    %472 = vmatpush.bf16.msra.mxu0 0
    %473 = vmatpush.bf16.msra.mxu0 0
    %474 = vmatpush.bf16.msra.mxu0 0
    %475 = vmatpush.bf16.msra.mxu0 0
    %476 = vmatpush.bf16.msra.mxu0 0
    %477 = vmatpush.bf16.msra.mxu0 0
    %478 = vmatpush.bf16.msra.mxu0 0
    %479 = vmatpush.bf16.msra.mxu0 %v470
    %480 = vmatmul.bf16.gmra.mxu0 %v467
    %v481 = vpop.f32.mrf.mxu0
    %v482 = vadd.f32 0.0, %v481
    %v483 = vpop.f32.mrf.mxu0
    %484 = vdwg.mxu0
    %v485 = vpack.c.bf16 %v482, %v482
    %v487 = vsel %vm278, %v485, 0
    %v490 = vsel %vm313, %v272, 0
    %492 = vmatpush.bf16.msra.mxu0 0
    %493 = vmatpush.bf16.msra.mxu0 0
    %494 = vmatpush.bf16.msra.mxu0 0
    %495 = vmatpush.bf16.msra.mxu0 0
    %496 = vmatpush.bf16.msra.mxu0 0
    %497 = vmatpush.bf16.msra.mxu0 0
    %498 = vmatpush.bf16.msra.mxu0 0
    %499 = vmatpush.bf16.msra.mxu0 %v490
    %500 = vmatmul.bf16.gmra.mxu0 %v487
    %v501 = vpop.f32.mrf.mxu0
    %v502 = vadd.f32 0.0, %v501
    %v503 = vpop.f32.mrf.mxu0
    %504 = vdwg.mxu0
    %v505 = vadd.f32 %v426, %v502
    %506 = vrot.lane.b32.xlu0 %v275, 104
    %v507 = vpop.permute.xlu0 %506
    %508 = vrot.lane.b32.xlu0 %v276, 104
    %v509 = vpop.permute.xlu0 %508
    %v511 = vsel %vm278, %v507, 0
    %v514 = vsel %vm278, %v509, 0
    %516 = vmatpush.bf16.xpose.msra.mxu0 0
    %517 = vmatpush.bf16.xpose.msra.mxu0 0
    %518 = vmatpush.bf16.xpose.msra.mxu0 0
    %519 = vmatpush.bf16.xpose.msra.mxu0 0
    %520 = vmatpush.bf16.xpose.msra.mxu0 0
    %521 = vmatpush.bf16.xpose.msra.mxu0 0
    %522 = vmatpush.bf16.xpose.msra.mxu0 0
    %523 = vmatpush.bf16.xpose.msra.mxu0 %v514
    %524 = vmatmul.bf16.gmra.mxu0 %v511
    %v525 = vpop.f32.mrf.mxu0
    %v526 = vadd.f32 0.0, %v525
    %v527 = vpop.f32.mrf.mxu0
    %528 = vdwg.mxu0
    %v529 = vsel %vm278, %v526, -inf
    %530 = vmax.xlane.f32.xlu0 %v529
    %v531 = vpop.xlane.xlu0 %530
    %v532 = vsub.f32 %v526, %v531
    %v533 = vmul.f32 %v532, 1.442695
    %v534 = vpow.pop %v533
    %v535 = vsel %vm278, %v534, 0.0
    %536 = vadd.xlane.f32.xlu0 %v535
    %v537 = vpop.xlane.xlu0 %536
    %v538 = vrcp.pop %v537
    %v539 = vmul.f32 %v534, %v538
    %v540 = vpack.c.bf16 %v539, %v539
    %541 = vrot.lane.b32.xlu0 %v277, 104
    %v542 = vpop.permute.xlu0 %541
    %v544 = vsel %vm278, %v540, 0
    %v547 = vsel %vm313, %v542, 0
    %549 = vmatpush.bf16.msra.mxu0 0
    %550 = vmatpush.bf16.msra.mxu0 0
    %551 = vmatpush.bf16.msra.mxu0 0
    %552 = vmatpush.bf16.msra.mxu0 0
    %553 = vmatpush.bf16.msra.mxu0 0
    %554 = vmatpush.bf16.msra.mxu0 0
    %555 = vmatpush.bf16.msra.mxu0 0
    %556 = vmatpush.bf16.msra.mxu0 %v547
    %557 = vmatmul.bf16.gmra.mxu0 %v544
    %v558 = vpop.f32.mrf.mxu0
    %v559 = vadd.f32 0.0, %v558
    %v560 = vpop.f32.mrf.mxu0
    %561 = vdwg.mxu0
    %v562 = vpack.c.bf16 %v559, %v559
    %v564 = vsel %vm278, %v562, 0
    %v567 = vsel %vm313, %v273, 0
    %569 = vmatpush.bf16.msra.mxu0 0
    %570 = vmatpush.bf16.msra.mxu0 0
    %571 = vmatpush.bf16.msra.mxu0 0
    %572 = vmatpush.bf16.msra.mxu0 0
    %573 = vmatpush.bf16.msra.mxu0 0
    %574 = vmatpush.bf16.msra.mxu0 0
    %575 = vmatpush.bf16.msra.mxu0 0
    %576 = vmatpush.bf16.msra.mxu0 %v567
    %577 = vmatmul.bf16.gmra.mxu0 %v564
    %v578 = vpop.f32.mrf.mxu0
    %v579 = vadd.f32 0.0, %v578
    %v580 = vpop.f32.mrf.mxu0
    %581 = vdwg.mxu0
    %v582 = vadd.f32 %v505, %v579
    %v584 = vperm.slane %v274, 0
    %v586 = vadd.f32 %v582, %v584
    %587 = vst.msk [vmem:[#allocation14] sm:$0xff] %vm178, %v586
    %v588 = vpack.c.bf16 %v194, %v194
    %v589 = vpack.c.bf16 %v231, %v231
    %v590 = vpack.c.bf16 %v268, %v268
    %v592 = vsel %vm278, %v588, 0
    %v595 = vsel %vm278, %v589, 0
    %597 = vmatpush.bf16.xpose.msra.mxu0 0
    %598 = vmatpush.bf16.xpose.msra.mxu0 0
    %599 = vmatpush.bf16.xpose.msra.mxu0 0
    %600 = vmatpush.bf16.xpose.msra.mxu0 0
    %601 = vmatpush.bf16.xpose.msra.mxu0 0
    %602 = vmatpush.bf16.xpose.msra.mxu0 0
    %603 = vmatpush.bf16.xpose.msra.mxu0 0
    %604 = vmatpush.bf16.xpose.msra.mxu0 %v595
    %605 = vmatmul.bf16.gmra.mxu0 %v592
    %v606 = vpop.f32.mrf.mxu0
    %v607 = vadd.f32 0.0, %v606
    %v608 = vpop.f32.mrf.mxu0
    %609 = vdwg.mxu0
    %v610 = vsel %vm278, %v607, -inf
    %611 = vmax.xlane.f32.xlu0 %v610
    %v612 = vpop.xlane.xlu0 %611
    %v613 = vsub.f32 %v607, %v612
    %v614 = vmul.f32 %v613, 1.442695
    %v615 = vpow.pop %v614
    %v616 = vsel %vm278, %v615, 0.0
    %617 = vadd.xlane.f32.xlu0 %v616
    %v618 = vpop.xlane.xlu0 %617
    %v619 = vrcp.pop %v618
    %v620 = vmul.f32 %v615, %v619
    %v621 = vpack.c.bf16 %v620, %v620
    %v623 = vsel %vm278, %v621, 0
    %v626 = vsel %vm313, %v590, 0
    %628 = vmatpush.bf16.msra.mxu0 0
    %629 = vmatpush.bf16.msra.mxu0 0
    %630 = vmatpush.bf16.msra.mxu0 0
    %631 = vmatpush.bf16.msra.mxu0 0
    %632 = vmatpush.bf16.msra.mxu0 0
    %633 = vmatpush.bf16.msra.mxu0 0
    %634 = vmatpush.bf16.msra.mxu0 0
    %635 = vmatpush.bf16.msra.mxu0 %v626
    %636 = vmatmul.bf16.gmra.mxu0 %v623
    %v637 = vpop.f32.mrf.mxu0
    %v638 = vadd.f32 0.0, %v637
    %v639 = vpop.f32.mrf.mxu0
    %640 = vdwg.mxu0
    %v641 = vpack.c.bf16 %v638, %v638
    %643 = vrot.lane.b32.xlu0 %v588, 120
    %v644 = vpop.permute.xlu0 %643
    %646 = vrot.lane.b32.xlu0 %v589, 120
    %v647 = vpop.permute.xlu0 %646
    %v649 = vsel %vm278, %v644, 0
    %v652 = vsel %vm278, %v647, 0
    %654 = vmatpush.bf16.xpose.msra.mxu0 0
    %655 = vmatpush.bf16.xpose.msra.mxu0 0
    %656 = vmatpush.bf16.xpose.msra.mxu0 0
    %657 = vmatpush.bf16.xpose.msra.mxu0 0
    %658 = vmatpush.bf16.xpose.msra.mxu0 0
    %659 = vmatpush.bf16.xpose.msra.mxu0 0
    %660 = vmatpush.bf16.xpose.msra.mxu0 0
    %661 = vmatpush.bf16.xpose.msra.mxu0 %v652
    %662 = vmatmul.bf16.gmra.mxu0 %v649
    %v663 = vpop.f32.mrf.mxu0
    %v664 = vadd.f32 0.0, %v663
    %v665 = vpop.f32.mrf.mxu0
    %666 = vdwg.mxu0
    %v667 = vsel %vm278, %v664, -inf
    %668 = vmax.xlane.f32.xlu0 %v667
    %v669 = vpop.xlane.xlu0 %668
    %v670 = vsub.f32 %v664, %v669
    %v671 = vmul.f32 %v670, 1.442695
    %v672 = vpow.pop %v671
    %v673 = vsel %vm278, %v672, 0.0
    %674 = vadd.xlane.f32.xlu0 %v673
    %v675 = vpop.xlane.xlu0 %674
    %v676 = vrcp.pop %v675
    %v677 = vmul.f32 %v672, %v676
    %v678 = vpack.c.bf16 %v677, %v677
    %680 = vrot.lane.b32.xlu0 %v590, 120
    %v681 = vpop.permute.xlu0 %680
    %v683 = vsel %vm278, %v678, 0
    %v686 = vsel %vm313, %v681, 0
    %688 = vmatpush.bf16.msra.mxu0 0
    %689 = vmatpush.bf16.msra.mxu0 0
    %690 = vmatpush.bf16.msra.mxu0 0
    %691 = vmatpush.bf16.msra.mxu0 0
    %692 = vmatpush.bf16.msra.mxu0 0
    %693 = vmatpush.bf16.msra.mxu0 0
    %694 = vmatpush.bf16.msra.mxu0 0
    %695 = vmatpush.bf16.msra.mxu0 %v686
    %696 = vmatmul.bf16.gmra.mxu0 %v683
    %v697 = vpop.f32.mrf.mxu0
    %v698 = vadd.f32 0.0, %v697
    %v699 = vpop.f32.mrf.mxu0
    %700 = vdwg.mxu0
    %v701 = vpack.c.bf16 %v698, %v698
    %v703 = vsel %vm278, %v701, 0
    %705 = vmatpush.bf16.msra.mxu0 0
    %706 = vmatpush.bf16.msra.mxu0 0
    %707 = vmatpush.bf16.msra.mxu0 0
    %708 = vmatpush.bf16.msra.mxu0 0
    %709 = vmatpush.bf16.msra.mxu0 0
    %710 = vmatpush.bf16.msra.mxu0 0
    %711 = vmatpush.bf16.msra.mxu0 0
    %712 = vmatpush.bf16.msra.mxu0 %v395
    %713 = vmatmul.bf16.gmra.mxu0 %v703
    %v714 = vpop.f32.mrf.mxu0
    %v715 = vadd.f32 0.0, %v714
    %v716 = vpop.f32.mrf.mxu0
    %717 = vdwg.mxu0
    %v719 = vsel %vm278, %v641, 0
    %721 = vmatpush.bf16.msra.mxu0 0
    %722 = vmatpush.bf16.msra.mxu0 0
    %723 = vmatpush.bf16.msra.mxu0 0
    %724 = vmatpush.bf16.msra.mxu0 0
    %725 = vmatpush.bf16.msra.mxu0 0
    %726 = vmatpush.bf16.msra.mxu0 0
    %727 = vmatpush.bf16.msra.mxu0 0
    %728 = vmatpush.bf16.msra.mxu0 %v414
    %729 = vmatmul.bf16.gmra.mxu0 %v719
    %v730 = vpop.f32.mrf.mxu0
    %v731 = vadd.f32 %v715, %v730
    %v732 = vpop.f32.mrf.mxu0
    %733 = vdwg.mxu0
    %734 = vrot.lane.b32.xlu0 %v588, 112
    %v735 = vpop.permute.xlu0 %734
    %736 = vrot.lane.b32.xlu0 %v589, 112
    %v737 = vpop.permute.xlu0 %736
    %v739 = vsel %vm278, %v735, 0
    %v742 = vsel %vm278, %v737, 0
    %744 = vmatpush.bf16.xpose.msra.mxu0 0
    %745 = vmatpush.bf16.xpose.msra.mxu0 0
    %746 = vmatpush.bf16.xpose.msra.mxu0 0
    %747 = vmatpush.bf16.xpose.msra.mxu0 0
    %748 = vmatpush.bf16.xpose.msra.mxu0 0
    %749 = vmatpush.bf16.xpose.msra.mxu0 0
    %750 = vmatpush.bf16.xpose.msra.mxu0 0
    %751 = vmatpush.bf16.xpose.msra.mxu0 %v742
    %752 = vmatmul.bf16.gmra.mxu0 %v739
    %v753 = vpop.f32.mrf.mxu0
    %v754 = vadd.f32 0.0, %v753
    %v755 = vpop.f32.mrf.mxu0
    %756 = vdwg.mxu0
    %v757 = vsel %vm278, %v754, -inf
    %758 = vmax.xlane.f32.xlu0 %v757
    %v759 = vpop.xlane.xlu0 %758
    %v760 = vsub.f32 %v754, %v759
    %v761 = vmul.f32 %v760, 1.442695
    %v762 = vpow.pop %v761
    %v763 = vsel %vm278, %v762, 0.0
    %764 = vadd.xlane.f32.xlu0 %v763
    %v765 = vpop.xlane.xlu0 %764
    %v766 = vrcp.pop %v765
    %v767 = vmul.f32 %v762, %v766
    %v768 = vpack.c.bf16 %v767, %v767
    %769 = vrot.lane.b32.xlu0 %v590, 112
    %v770 = vpop.permute.xlu0 %769
    %v772 = vsel %vm278, %v768, 0
    %v775 = vsel %vm313, %v770, 0
    %777 = vmatpush.bf16.msra.mxu0 0
    %778 = vmatpush.bf16.msra.mxu0 0
    %779 = vmatpush.bf16.msra.mxu0 0
    %780 = vmatpush.bf16.msra.mxu0 0
    %781 = vmatpush.bf16.msra.mxu0 0
    %782 = vmatpush.bf16.msra.mxu0 0
    %783 = vmatpush.bf16.msra.mxu0 0
    %784 = vmatpush.bf16.msra.mxu0 %v775
    %785 = vmatmul.bf16.gmra.mxu0 %v772
    %v786 = vpop.f32.mrf.mxu0
    %v787 = vadd.f32 0.0, %v786
    %v788 = vpop.f32.mrf.mxu0
    %789 = vdwg.mxu0
    %v790 = vpack.c.bf16 %v787, %v787
    %v792 = vsel %vm278, %v790, 0
    %794 = vmatpush.bf16.msra.mxu0 0
    %795 = vmatpush.bf16.msra.mxu0 0
    %796 = vmatpush.bf16.msra.mxu0 0
    %797 = vmatpush.bf16.msra.mxu0 0
    %798 = vmatpush.bf16.msra.mxu0 0
    %799 = vmatpush.bf16.msra.mxu0 0
    %800 = vmatpush.bf16.msra.mxu0 0
    %801 = vmatpush.bf16.msra.mxu0 %v490
    %802 = vmatmul.bf16.gmra.mxu0 %v792
    %v803 = vpop.f32.mrf.mxu0
    %v804 = vadd.f32 0.0, %v803
    %v805 = vpop.f32.mrf.mxu0
    %806 = vdwg.mxu0
    %v807 = vadd.f32 %v731, %v804
    %808 = vrot.lane.b32.xlu0 %v588, 104
    %v809 = vpop.permute.xlu0 %808
    %810 = vrot.lane.b32.xlu0 %v589, 104
    %v811 = vpop.permute.xlu0 %810
    %v813 = vsel %vm278, %v809, 0
    %v816 = vsel %vm278, %v811, 0
    %818 = vmatpush.bf16.xpose.msra.mxu0 0
    %819 = vmatpush.bf16.xpose.msra.mxu0 0
    %820 = vmatpush.bf16.xpose.msra.mxu0 0
    %821 = vmatpush.bf16.xpose.msra.mxu0 0
    %822 = vmatpush.bf16.xpose.msra.mxu0 0
    %823 = vmatpush.bf16.xpose.msra.mxu0 0
    %824 = vmatpush.bf16.xpose.msra.mxu0 0
    %825 = vmatpush.bf16.xpose.msra.mxu0 %v816
    %826 = vmatmul.bf16.gmra.mxu0 %v813
    %v827 = vpop.f32.mrf.mxu0
    %v828 = vadd.f32 0.0, %v827
    %v829 = vpop.f32.mrf.mxu0
    %830 = vdwg.mxu0
    %v831 = vsel %vm278, %v828, -inf
    %832 = vmax.xlane.f32.xlu0 %v831
    %v833 = vpop.xlane.xlu0 %832
    %v834 = vsub.f32 %v828, %v833
    %v835 = vmul.f32 %v834, 1.442695
    %v836 = vpow.pop %v835
    %v837 = vsel %vm278, %v836, 0.0
    %838 = vadd.xlane.f32.xlu0 %v837
    %v839 = vpop.xlane.xlu0 %838
    %v840 = vrcp.pop %v839
    %v841 = vmul.f32 %v836, %v840
    %v842 = vpack.c.bf16 %v841, %v841
    %843 = vrot.lane.b32.xlu0 %v590, 104
    %v844 = vpop.permute.xlu0 %843
    %v846 = vsel %vm278, %v842, 0
    %v849 = vsel %vm313, %v844, 0
    %851 = vmatpush.bf16.msra.mxu0 0
    %852 = vmatpush.bf16.msra.mxu0 0
    %853 = vmatpush.bf16.msra.mxu0 0
    %854 = vmatpush.bf16.msra.mxu0 0
    %855 = vmatpush.bf16.msra.mxu0 0
    %856 = vmatpush.bf16.msra.mxu0 0
    %857 = vmatpush.bf16.msra.mxu0 0
    %858 = vmatpush.bf16.msra.mxu0 %v849
    %859 = vmatmul.bf16.gmra.mxu0 %v846
    %v860 = vpop.f32.mrf.mxu0
    %v861 = vadd.f32 0.0, %v860
    %v862 = vpop.f32.mrf.mxu0
    %863 = vdwg.mxu0
    %v864 = vpack.c.bf16 %v861, %v861
    %v866 = vsel %vm278, %v864, 0
    %868 = vmatpush.bf16.msra.mxu0 0
    %869 = vmatpush.bf16.msra.mxu0 0
    %870 = vmatpush.bf16.msra.mxu0 0
    %871 = vmatpush.bf16.msra.mxu0 0
    %872 = vmatpush.bf16.msra.mxu0 0
    %873 = vmatpush.bf16.msra.mxu0 0
    %874 = vmatpush.bf16.msra.mxu0 0
    %875 = vmatpush.bf16.msra.mxu0 %v567
    %876 = vmatmul.bf16.gmra.mxu0 %v866
    %v877 = vpop.f32.mrf.mxu0
    %v878 = vadd.f32 0.0, %v877
    %v879 = vpop.f32.mrf.mxu0
    %880 = vdwg.mxu0
    %v881 = vadd.f32 %v807, %v878
    %v882 = vadd.f32 %v881, %v584
    %883 = vst.msk [vmem:[#allocation14 + $0x8] sm:$0xff] %vm178, %v882
    // Predicated region
    $region74: #{tpu_custom_call.1} parent=1 // pred_check
      _
    $region75: #{tpu_custom_call.1} parent=1 // pred_check_branch
      %885 = sbr.rel (0) target = $region77
    $region76: #{tpu_custom_call.1} parent=1 // pred_region
      %887 = vsyncadd [#allocation4], 0
      %s888 = sshll.u32 [#allocation14], 4
      %s889 = int_to_ptr.vmem [resolvable:$true] %s888
      %s890 = sshll.u32 %s11, 4
      %s891 = int_to_ptr.hbm [resolvable:$true] %s890
      %896 = dma.vmem_to_hbm [thread:$0]  %s889, 256, %s891, [#allocation4], 128, 128, 8
    $region77: #{tpu_custom_call.1} parent=1 // pred_fallthru
      _
    // Predicated region
    $region78: #{tpu_custom_call.1} parent=1 // pred_check
      _
    $region79: #{tpu_custom_call.1} parent=1 // pred_check_branch
      %898 = sbr.rel (0) target = $region81
    $region80: #{tpu_custom_call.1} parent=1 // pred_region
      %900 = dma.done [#allocation4], 256
    $region81: #{tpu_custom_call.1} parent=1 // pred_fallthru
      _
    %901 = vsyncpa [#allocation3], 1
    %902 = vsyncpa [#allocation6], 1
    %903 = vsyncpa [#allocation9], 1
    %904 = vsyncpa [#allocation12], 1
    %905 = vsyncpa [#allocation4], 1

</llo_original>
